<compile_context>
chip_gen: v6e
topology: v6e:2x2x1
jax: 0.10.0
libtpu: 0.0.40
codegen_flags: <defaults>
</compile_context>

<pallas_src>
import functools

import jax
import jax.numpy as jnp
from jax.experimental import pallas as pl
from jax.experimental.pallas import tpu as pltpu

LANE = 128      # lane width / padded output feature dim
TB_MAX = 512    # max batch tile (multiple of 256, good for v6e/v7x MXU)


def _round_up(n, m):
    return ((n + m - 1) // m) * m


def net2_kernel(x_ref, w1_ref, b1_ref, w2_ref, b2_ref, w3_ref, b3_ref, o_ref):
    # fc1 + relu  (bf16 matmul, f32 accumulate + epilogue)
    h1 = jnp.dot(x_ref[...], w1_ref[...], preferred_element_type=jnp.float32)
    h1 = jnp.maximum(h1 + b1_ref[...], 0.0)
    # fc2 + relu
    h2 = jnp.dot(h1.astype(w2_ref.dtype), w2_ref[...],
                 preferred_element_type=jnp.float32)
    h2 = jnp.maximum(h2 + b2_ref[...], 0.0)
    # fc3 (padded to 128 lanes) + sigmoid
    z3 = jnp.dot(h2.astype(w3_ref.dtype), w3_ref[...],
                 preferred_element_type=jnp.float32) + b3_ref[...]
    o_ref[...] = jax.nn.sigmoid(z3).astype(o_ref.dtype)


@functools.partial(jax.jit, static_argnames=("tb_max",))
def net2_forward(x, params, *, tb_max=TB_MAX):
    """x: [B, input_dim] float32. Returns [B, 1] float32."""
    w1, b1, w2, b2, w3, b3 = params
    B, in_dim = x.shape
    hid = w1.shape[1]
    hid2 = w2.shape[1]

    # Batch tile: multiple of 8, capped at tb_max; pad batch to a tile multiple.
    TB = min(tb_max, _round_up(B, 8))
    B_pad = _round_up(B, TB)
    if B_pad != B:
        x = jnp.pad(x, ((0, B_pad - B), (0, 0)))

    # bf16 matmul operands; biases stay f32. fc3 weight/bias padded to 128 lanes
    # so the output store is lane-dense (unmasked vst).
    xb = x.astype(jnp.bfloat16)
    w1b = w1.astype(jnp.bfloat16)
    w2b = w2.astype(jnp.bfloat16)
    w3p = jnp.zeros((hid2, LANE), jnp.bfloat16).at[:, : w3.shape[1]].set(
        w3.astype(jnp.bfloat16))
    b3p = jnp.zeros((1, LANE), jnp.float32).at[:, : b3.shape[1]].set(
        b3.astype(jnp.float32))

    grid = (pl.cdiv(B_pad, TB),)

    # x / out tiles stream over the batch grid; weights & biases are resident
    # (constant index_map -> no re-DMA across grid steps).
    x_spec = pl.BlockSpec((TB, in_dim), lambda i: (i, 0))
    o_spec = pl.BlockSpec((TB, LANE), lambda i: (i, 0))
    resident = lambda a: pl.BlockSpec(a.shape, lambda i: (0, 0))

    flops = 2 * B_pad * (in_dim * hid + hid * hid2 + hid2 * LANE)
    bytes_accessed = (
        B_pad * in_dim * 2                      # x (bf16 in)
        + (in_dim * hid + hid * hid2 + hid2 * LANE) * 2   # weights (bf16)
        + (hid + hid2 + LANE) * 4               # biases (f32)
        + B_pad * LANE * 4                      # output (f32)
    )
    cost = pl.CostEstimate(flops=flops,
                           transcendentals=B_pad * LANE,
                           bytes_accessed=bytes_accessed)

    out = pl.pallas_call(
        net2_kernel,
        out_shape=jax.ShapeDtypeStruct((B_pad, LANE), jnp.float32),
        grid=grid,
        in_specs=[x_spec, resident(w1b), resident(b1), resident(w2b),
                  resident(b2), resident(w3p), resident(b3p)],
        out_specs=o_spec,
        compiler_params=pltpu.CompilerParams(
            dimension_semantics=("parallel",),
            vmem_limit_bytes=32 * 1024 * 1024,
        ),
        cost_estimate=cost,
    )(xb, w1b, b1, w2b, b2, w3p, b3p)

    return out[:B, :1]


def init_net2_params(key, input_dim, hidden_dim):
    """Deterministic init mimicking PyTorch nn.Linear (uniform +/- 1/sqrt(fan_in))."""
    def linear(key, fan_in, fan_out):
        kw, kb = jax.random.split(key)
        bound = 1.0 / jnp.sqrt(fan_in)
        # stored as [in, out] (transpose of PyTorch's [out, in] weight)
        w = jax.random.uniform(kw, (fan_in, fan_out), jnp.float32, -bound, bound)
        b = jax.random.uniform(kb, (1, fan_out), jnp.float32, -bound, bound)
        return w, b

    k1, k2, k3 = jax.random.split(key, 3)
    w1, b1 = linear(k1, input_dim, hidden_dim)
    w2, b2 = linear(k2, hidden_dim, hidden_dim // 2)
    w3, b3 = linear(k3, hidden_dim // 2, 1)
    return (w1, b1, w2, b2, w3, b3)


def net2_reference(x, params):
    """Plain-JAX reference using the same bf16 matmul operands / f32 epilogue."""
    w1, b1, w2, b2, w3, b3 = params
    xb = x.astype(jnp.bfloat16)
    w1b, w2b, w3b = (w.astype(jnp.bfloat16) for w in (w1, w2, w3))
    h1 = jnp.maximum(
        jnp.dot(xb, w1b, preferred_element_type=jnp.float32) + b1, 0.0)
    h2 = jnp.maximum(
        jnp.dot(h1.astype(jnp.bfloat16), w2b,
                preferred_element_type=jnp.float32) + b2, 0.0)
    z3 = jnp.dot(h2.astype(jnp.bfloat16), w3b,
                 preferred_element_type=jnp.float32) + b3
    return jax.nn.sigmoid(z3)


if __name__ == "__main__":
    key = jax.random.PRNGKey(0)
    kx, kp, kx2 = jax.random.split(key, 3)

    batch, input_dim, hidden_dim = 2, 16, 32
    params = init_net2_params(kp, input_dim, hidden_dim)

    # Small-shape check (single partial-size tile, padded to 8 rows internally).
    x = jax.random.normal(kx, (batch, input_dim), jnp.float32)
    out = jax.block_until_ready(net2_forward(x, params))
    ref = net2_reference(x, params)
    assert out.shape == (batch, 1)
    assert jnp.allclose(out, ref, atol=2e-3, rtol=2e-3)

    # Multi-block check (exercises the batch grid + tail padding): B=1000 -> TB=512.
    x2 = jax.random.normal(kx2, (1000, input_dim), jnp.float32)
    out2 = jax.block_until_ready(net2_forward(x2, params))
    ref2 = net2_reference(x2, params)
    assert out2.shape == (1000, 1)
    assert jnp.allclose(out2, ref2, atol=2e-3, rtol=2e-3)

    print("KERNEL_OK")
</pallas_src>

<mosaic_0001>
module attributes {stable_mosaic.version = 11 : i64} {
  func.func @net2_kernel(%arg0: i32, %arg1: memref<8x16xbf16, #tpu.memory_space<vmem>>, %arg2: memref<16x32xbf16, #tpu.memory_space<vmem>>, %arg3: memref<1x32xf32, #tpu.memory_space<vmem>>, %arg4: memref<32x16xbf16, #tpu.memory_space<vmem>>, %arg5: memref<1x16xf32, #tpu.memory_space<vmem>>, %arg6: memref<16x128xbf16, #tpu.memory_space<vmem>>, %arg7: memref<1x128xf32, #tpu.memory_space<vmem>>, %arg8: memref<8x128xf32, #tpu.memory_space<vmem>>) attributes {dimension_semantics = [#tpu.dimension_semantics<parallel>], iteration_bounds = array<i64: 1>, scalar_prefetch = 0 : i64, scratch_operands = 0 : i64, tpu.core_type = #tpu.core_type<tc>, window_params = [{transform_indices = @transform_0, window_bounds = array<i64: 8, 16>}, {pipeline_mode = #tpu.pipeline_mode<synchronous>, transform_indices = @transform_1, window_bounds = array<i64: 16, 32>}, {pipeline_mode = #tpu.pipeline_mode<synchronous>, transform_indices = @transform_2, window_bounds = array<i64: 1, 32>}, {pipeline_mode = #tpu.pipeline_mode<synchronous>, transform_indices = @transform_3, window_bounds = array<i64: 32, 16>}, {pipeline_mode = #tpu.pipeline_mode<synchronous>, transform_indices = @transform_4, window_bounds = array<i64: 1, 16>}, {pipeline_mode = #tpu.pipeline_mode<synchronous>, transform_indices = @transform_5, window_bounds = array<i64: 16, 128>}, {pipeline_mode = #tpu.pipeline_mode<synchronous>, transform_indices = @transform_6, window_bounds = array<i64: 1, 128>}, {transform_indices = @transform_7, window_bounds = array<i64: 8, 128>}]} {
    %c0 = arith.constant 0 : index
    %c0_0 = arith.constant 0 : index
    %0 = vector.load %arg1[%c0, %c0_0] : memref<8x16xbf16, #tpu.memory_space<vmem>>, vector<8x16xbf16>
    %c0_1 = arith.constant 0 : index
    %c0_2 = arith.constant 0 : index
    %1 = vector.load %arg2[%c0_1, %c0_2] : memref<16x32xbf16, #tpu.memory_space<vmem>>, vector<16x32xbf16>
    %cst = arith.constant dense<0.000000e+00> : vector<8x32xf32>
    %2 = tpu.matmul %0, %1, %cst {dimension_numbers = #tpu.dot_dimension_numbers<[1], [0], [0], [1], [0, 0, 1, 1], [], []>} : vector<8x16xbf16>, vector<16x32xbf16>, vector<8x32xf32> -> vector<8x32xf32>
    %c0_3 = arith.constant 0 : index
    %c0_4 = arith.constant 0 : index
    %3 = vector.load %arg3[%c0_3, %c0_4] : memref<1x32xf32, #tpu.memory_space<vmem>>, vector<1x32xf32>
    %4 = vector.broadcast %3 : vector<1x32xf32> to vector<8x32xf32>
    %5 = arith.addf %2, %4 : vector<8x32xf32>
    %cst_5 = arith.constant 0.000000e+00 : f32
    %6 = vector.broadcast %cst_5 : f32 to vector<8x32xf32>
    %7 = arith.maximumf %5, %6 : vector<8x32xf32>
    %8 = arith.truncf %7 : vector<8x32xf32> to vector<8x32xbf16>
    %c0_6 = arith.constant 0 : index
    %c0_7 = arith.constant 0 : index
    %9 = vector.load %arg4[%c0_6, %c0_7] : memref<32x16xbf16, #tpu.memory_space<vmem>>, vector<32x16xbf16>
    %cst_8 = arith.constant dense<0.000000e+00> : vector<8x16xf32>
    %10 = tpu.matmul %8, %9, %cst_8 {dimension_numbers = #tpu.dot_dimension_numbers<[1], [0], [0], [1], [0, 0, 1, 1], [], []>} : vector<8x32xbf16>, vector<32x16xbf16>, vector<8x16xf32> -> vector<8x16xf32>
    %c0_9 = arith.constant 0 : index
    %c0_10 = arith.constant 0 : index
    %11 = vector.load %arg5[%c0_9, %c0_10] : memref<1x16xf32, #tpu.memory_space<vmem>>, vector<1x16xf32>
    %12 = vector.broadcast %11 : vector<1x16xf32> to vector<8x16xf32>
    %13 = arith.addf %10, %12 : vector<8x16xf32>
    %cst_11 = arith.constant 0.000000e+00 : f32
    %14 = vector.broadcast %cst_11 : f32 to vector<8x16xf32>
    %15 = arith.maximumf %13, %14 : vector<8x16xf32>
    %16 = arith.truncf %15 : vector<8x16xf32> to vector<8x16xbf16>
    %c0_12 = arith.constant 0 : index
    %c0_13 = arith.constant 0 : index
    %17 = vector.load %arg6[%c0_12, %c0_13] : memref<16x128xbf16, #tpu.memory_space<vmem>>, vector<16x128xbf16>
    %cst_14 = arith.constant dense<0.000000e+00> : vector<8x128xf32>
    %18 = tpu.matmul %16, %17, %cst_14 {dimension_numbers = #tpu.dot_dimension_numbers<[1], [0], [0], [1], [0, 0, 1, 1], [], []>} : vector<8x16xbf16>, vector<16x128xbf16>, vector<8x128xf32> -> vector<8x128xf32>
    %c0_15 = arith.constant 0 : index
    %c0_16 = arith.constant 0 : index
    %19 = vector.load %arg7[%c0_15, %c0_16] : memref<1x128xf32, #tpu.memory_space<vmem>>, vector<1x128xf32>
    %20 = vector.broadcast %19 : vector<1x128xf32> to vector<8x128xf32>
    %21 = arith.addf %18, %20 : vector<8x128xf32>
    %22 = arith.negf %21 : vector<8x128xf32>
    %23 = math.exp %22 : vector<8x128xf32>
    %cst_17 = arith.constant 1.000000e+00 : f32
    %24 = vector.broadcast %cst_17 : f32 to vector<8x128xf32>
    %25 = arith.addf %24, %23 : vector<8x128xf32>
    %26 = arith.divf %24, %25 : vector<8x128xf32>
    %c0_18 = arith.constant 0 : index
    %c0_19 = arith.constant 0 : index
    %27 = vector.load %arg8[%c0_18, %c0_19] : memref<8x128xf32, #tpu.memory_space<vmem>>, vector<8x128xf32>
    tpu.vector_store %arg8[%c0_18, %c0_19], %26 {strides = array<i32>} : memref<8x128xf32, #tpu.memory_space<vmem>>, vector<8x128xf32>,
    return
  }
  func.func @transform_0(%arg0: i32) -> (i32, i32) {
    %c0_i32 = arith.constant 0 : i32
    %c0_i32_0 = arith.constant 0 : i32
    return %arg0, %c0_i32 : i32, i32
  }
  func.func @transform_1(%arg0: i32) -> (i32, i32) {
    %c0_i32 = arith.constant 0 : i32
    %c0_i32_0 = arith.constant 0 : i32
    %c0_i32_1 = arith.constant 0 : i32
    return %c0_i32, %c0_i32_0 : i32, i32
  }
  func.func @transform_2(%arg0: i32) -> (i32, i32) {
    %c0_i32 = arith.constant 0 : i32
    %c0_i32_0 = arith.constant 0 : i32
    %c0_i32_1 = arith.constant 0 : i32
    return %c0_i32, %c0_i32_0 : i32, i32
  }
  func.func @transform_3(%arg0: i32) -> (i32, i32) {
    %c0_i32 = arith.constant 0 : i32
    %c0_i32_0 = arith.constant 0 : i32
    %c0_i32_1 = arith.constant 0 : i32
    return %c0_i32, %c0_i32_0 : i32, i32
  }
  func.func @transform_4(%arg0: i32) -> (i32, i32) {
    %c0_i32 = arith.constant 0 : i32
    %c0_i32_0 = arith.constant 0 : i32
    %c0_i32_1 = arith.constant 0 : i32
    return %c0_i32, %c0_i32_0 : i32, i32
  }
  func.func @transform_5(%arg0: i32) -> (i32, i32) {
    %c0_i32 = arith.constant 0 : i32
    %c0_i32_0 = arith.constant 0 : i32
    %c0_i32_1 = arith.constant 0 : i32
    return %c0_i32, %c0_i32_0 : i32, i32
  }
  func.func @transform_6(%arg0: i32) -> (i32, i32) {
    %c0_i32 = arith.constant 0 : i32
    %c0_i32_0 = arith.constant 0 : i32
    %c0_i32_1 = arith.constant 0 : i32
    return %c0_i32, %c0_i32_0 : i32, i32
  }
  func.func @transform_7(%arg0: i32) -> (i32, i32) {
    %c0_i32 = arith.constant 0 : i32
    %c0_i32_0 = arith.constant 0 : i32
    return %arg0, %c0_i32 : i32, i32
  }
}

</mosaic_0001>

<llo_original>
// kernel: net2_forward.1
$region0: #{net2_forward.1}
  #allocation0 [shape = 'u32[]', space=smem, size = 0x4, offset = 0x4, fixed_abs, tag = 'smem constant byte address 0x4 - core index']
  #allocation1 [shape = 'u32[144,128]{1,0:T(1,128)}', space=vmem, size = 0x12000, scoped, tag = 'internal scratch']
  %s0 = inlined_call_operand.vmem [shape: bf16[8,16], index: 0, kind: input, shape index: {}]
  %s1 = inlined_call_operand.vmem [shape: bf16[16,32], index: 1, kind: input, shape index: {}]
  %s2 = inlined_call_operand.vmem [shape: f32[1,32], index: 2, kind: input, shape index: {}]
  %s3 = inlined_call_operand.vmem [shape: bf16[32,16], index: 3, kind: input, shape index: {}]
  %s4 = inlined_call_operand.vmem [shape: f32[1,16], index: 4, kind: input, shape index: {}]
  %s5 = inlined_call_operand.vmem [shape: bf16[16,128], index: 5, kind: input, shape index: {}]
  %s6 = inlined_call_operand.vmem [shape: f32[1,128], index: 6, kind: input, shape index: {}]
  %s7 = inlined_call_operand.vmem [shape: f32[8,128], index: 7, kind: output, shape index: {}]
  %s8 = sld [smem:[#allocation0]]
  $region38: #{net2_forward.1} parent=0
    _
  %s10 = ssub.s32 1, %s8
  %s11 = scalar_select 0, %s10, %s8
  // Predicated region
  $region2: #{net2_forward.1} parent=0 // pred_check
    _
  $region3: #{net2_forward.1} parent=0 // pred_check_branch
    %13 = sbr.rel (0) target = $region5
  $region4: #{net2_forward.1} parent=0 // pred_region
    _
  $region5: #{net2_forward.1} parent=0 // pred_fallthru
    _
  // Predicated region
  $region6: #{net2_forward.1} parent=0 // pred_check
    _
  $region7: #{net2_forward.1} parent=0 // pred_check_branch
    %15 = sbr.rel (0) target = $region9
  $region8: #{net2_forward.1} parent=0 // pred_region
    _
  $region9: #{net2_forward.1} parent=0 // pred_fallthru
    _
  // Predicated region
  $region10: #{net2_forward.1} parent=0 // pred_check
    _
  $region11: #{net2_forward.1} parent=0 // pred_check_branch
    %17 = sbr.rel (0) target = $region13
  $region12: #{net2_forward.1} parent=0 // pred_region
    _
  $region13: #{net2_forward.1} parent=0 // pred_fallthru
    _
  // Predicated region
  $region14: #{net2_forward.1} parent=0 // pred_check
    _
  $region15: #{net2_forward.1} parent=0 // pred_check_branch
    %19 = sbr.rel (0) target = $region17
  $region16: #{net2_forward.1} parent=0 // pred_region
    _
  $region17: #{net2_forward.1} parent=0 // pred_fallthru
    _
  // Predicated region
  $region18: #{net2_forward.1} parent=0 // pred_check
    _
  $region19: #{net2_forward.1} parent=0 // pred_check_branch
    %21 = sbr.rel (0) target = $region21
  $region20: #{net2_forward.1} parent=0 // pred_region
    _
  $region21: #{net2_forward.1} parent=0 // pred_fallthru
    _
  // Predicated region
  $region22: #{net2_forward.1} parent=0 // pred_check
    _
  $region23: #{net2_forward.1} parent=0 // pred_check_branch
    %23 = sbr.rel (0) target = $region25
  $region24: #{net2_forward.1} parent=0 // pred_region
    _
  $region25: #{net2_forward.1} parent=0 // pred_fallthru
    _
  // Predicated region
  $region26: #{net2_forward.1} parent=0 // pred_check
    _
  $region27: #{net2_forward.1} parent=0 // pred_check_branch
    %25 = sbr.rel (0) target = $region29
  $region28: #{net2_forward.1} parent=0 // pred_region
    _
  $region29: #{net2_forward.1} parent=0 // pred_fallthru
    _
  %v27 = vld [vmem:[%s0] sm:$0xf]
  %v28 = vld [vmem:[%s1] sm:$0xf]
  %v29 = vld [vmem:[%s1 + $0x4] sm:$0xf]
  %v30 = vld [vmem:[%s2] sm:$0x1]
  %v32 = vlaneseq
  %v33 = vshrl.u32 %v32, 7
  %v34 = vsub.s32 0, %v33
  %v35 = vrot.slane %v30, %v34
  %v39 = vunpack.c.l.b16 %v28
  %v40 = vunpack.c.l.b16 %v29
  %v41 = vpack.c.b16 %v40, %v39
  %vm43 = vcmask 130048
  %v45 = vsel %vm43, %v27, 0
  %47 = vmatprep.subr.bf16.mxu0 0
  %48 = vmatpush1.bf16.msra.mxu0 0
  %49 = vmatprep.subr.bf16.mxu0 0
  %50 = vmatpush1.bf16.msra.mxu0 0
  %51 = vmatprep.subr.bf16.mxu0 0
  %52 = vmatpush1.bf16.msra.mxu0 0
  %53 = vmatprep.subr.bf16.mxu0 0
  %54 = vmatpush1.bf16.msra.mxu0 0
  %55 = vmatprep.subr.bf16.mxu0 0
  %56 = vmatpush1.bf16.msra.mxu0 0
  %57 = vmatprep.subr.bf16.mxu0 0
  %58 = vmatpush1.bf16.msra.mxu0 0
  %59 = vmatprep.subr.bf16.mxu0 0
  %60 = vmatpush1.bf16.msra.mxu0 0
  %61 = vmatprep.subr.bf16.mxu0 0
  %62 = vmatpush1.bf16.msra.mxu0 %v41
  %63 = vmatprep.subr.bf16.mxu0 0
  %64 = vmatpush2.bf16.msra.mxu0 0
  %65 = vmatprep.subr.bf16.mxu0 0
  %66 = vmatpush2.bf16.msra.mxu0 0
  %67 = vmatprep.subr.bf16.mxu0 0
  %68 = vmatpush2.bf16.msra.mxu0 0
  %69 = vmatprep.subr.bf16.mxu0 0
  %70 = vmatpush2.bf16.msra.mxu0 0
  %71 = vmatprep.subr.bf16.mxu0 0
  %72 = vmatpush2.bf16.msra.mxu0 0
  %73 = vmatprep.subr.bf16.mxu0 0
  %74 = vmatpush2.bf16.msra.mxu0 0
  %75 = vmatprep.subr.bf16.mxu0 0
  %76 = vmatpush2.bf16.msra.mxu0 0
  %77 = vmatprep.subr.bf16.mxu0 0
  %78 = vmatpush2.bf16.msra.mxu0 0
  %79 = vmatprep.mubr.bf16.mxu0 0
  %80 = vmatmul.mubr.bf16.gmra.mxu0 %v45
  %v81 = vpop.f32.mrf.mxu0
  %v82 = vadd.f32 %v35, %v81
  %v83 = vpop.f32.mrf.mxu0
  %v84 = vpop.f32.mrf.mxu0
  %v85 = vpop.f32.mrf.mxu0
  %86 = vdwg.mxu0
  %v87 = vmax.f32 %v82, 0.0
  %v88 = vpack.c.bf16 %v87, %v87
  %v89 = vld [vmem:[%s3] sm:$0xf]
  %v90 = vld [vmem:[%s3 + $0x4] sm:$0xf]
  %v91 = vld [vmem:[%s3 + $0x8] sm:$0xf]
  %v92 = vld [vmem:[%s3 + $0xc] sm:$0xf]
  %v93 = vld [vmem:[%s4] sm:$0x1]
  %v95 = vlaneseq
  %v96 = vshrl.u32 %v95, 7
  %v97 = vsub.s32 0, %v96
  %v98 = vrot.slane %v93, %v97
  %v104 = vunpack.c.l.b16 %v89
  %v105 = vunpack.c.l.b16 %v90
  %v106 = vunpack.c.l.b16 %v91
  %v107 = vunpack.c.l.b16 %v92
  %v108 = vpack.c.b16 %v105, %v104
  %v109 = vpack.c.b16 %v107, %v106
  %vm112 = vcmask 261120
  %v114 = vsel %vm112, %v88, 0
  %116 = vmatprep.subr.bf16.mxu0 0
  %117 = vmatpush1.bf16.msra.mxu0 0
  %118 = vmatprep.subr.bf16.mxu0 0
  %119 = vmatpush1.bf16.msra.mxu0 0
  %120 = vmatprep.subr.bf16.mxu0 0
  %121 = vmatpush1.bf16.msra.mxu0 0
  %122 = vmatprep.subr.bf16.mxu0 0
  %123 = vmatpush1.bf16.msra.mxu0 0
  %124 = vmatprep.subr.bf16.mxu0 0
  %125 = vmatpush1.bf16.msra.mxu0 0
  %126 = vmatprep.subr.bf16.mxu0 0
  %127 = vmatpush1.bf16.msra.mxu0 0
  %128 = vmatprep.subr.bf16.mxu0 0
  %129 = vmatpush1.bf16.msra.mxu0 %v109
  %130 = vmatprep.subr.bf16.mxu0 0
  %131 = vmatpush1.bf16.msra.mxu0 %v108
  %132 = vmatprep.subr.bf16.mxu0 0
  %133 = vmatpush2.bf16.msra.mxu0 0
  %134 = vmatprep.subr.bf16.mxu0 0
  %135 = vmatpush2.bf16.msra.mxu0 0
  %136 = vmatprep.subr.bf16.mxu0 0
  %137 = vmatpush2.bf16.msra.mxu0 0
  %138 = vmatprep.subr.bf16.mxu0 0
  %139 = vmatpush2.bf16.msra.mxu0 0
  %140 = vmatprep.subr.bf16.mxu0 0
  %141 = vmatpush2.bf16.msra.mxu0 0
  %142 = vmatprep.subr.bf16.mxu0 0
  %143 = vmatpush2.bf16.msra.mxu0 0
  %144 = vmatprep.subr.bf16.mxu0 0
  %145 = vmatpush2.bf16.msra.mxu0 0
  %146 = vmatprep.subr.bf16.mxu0 0
  %147 = vmatpush2.bf16.msra.mxu0 0
  %148 = vmatprep.mubr.bf16.mxu0 0
  %149 = vmatmul.mubr.bf16.gmra.mxu0 %v114
  %v150 = vpop.f32.mrf.mxu0
  %v151 = vadd.f32 %v98, %v150
  %v152 = vpop.f32.mrf.mxu0
  %v153 = vpop.f32.mrf.mxu0
  %v154 = vpop.f32.mrf.mxu0
  %155 = vdwg.mxu0
  %v156 = vmax.f32 %v151, 0.0
  %v157 = vpack.c.bf16 %v156, %v156
  %v158 = vld [vmem:[%s5] sm:$0xf]
  %v159 = vld [vmem:[%s5 + $0x4] sm:$0xf]
  %v160 = vld [vmem:[%s6] sm:$0x1]
  %v162 = vlaneseq
  %v163 = vshrl.u32 %v162, 7
  %v164 = vsub.s32 0, %v163
  %v165 = vrot.slane %v160, %v164
  %v169 = vunpack.c.l.b16 %v158
  %v170 = vunpack.c.l.b16 %v159
  %v171 = vpack.c.b16 %v170, %v169
  %v174 = vsel %vm43, %v157, 0
  %176 = vmatprep.subr.bf16.mxu0 0
  %177 = vmatpush1.bf16.msra.mxu0 0
  %178 = vmatprep.subr.bf16.mxu0 0
  %179 = vmatpush1.bf16.msra.mxu0 0
  %180 = vmatprep.subr.bf16.mxu0 0
  %181 = vmatpush1.bf16.msra.mxu0 0
  %182 = vmatprep.subr.bf16.mxu0 0
  %183 = vmatpush1.bf16.msra.mxu0 0
  %184 = vmatprep.subr.bf16.mxu0 0
  %185 = vmatpush1.bf16.msra.mxu0 0
  %186 = vmatprep.subr.bf16.mxu0 0
  %187 = vmatpush1.bf16.msra.mxu0 0
  %188 = vmatprep.subr.bf16.mxu0 0
  %189 = vmatpush1.bf16.msra.mxu0 0
  %190 = vmatprep.subr.bf16.mxu0 0
  %191 = vmatpush1.bf16.msra.mxu0 %v171
  %192 = vmatprep.subr.bf16.mxu0 0
  %193 = vmatpush2.bf16.msra.mxu0 0
  %194 = vmatprep.subr.bf16.mxu0 0
  %195 = vmatpush2.bf16.msra.mxu0 0
  %196 = vmatprep.subr.bf16.mxu0 0
  %197 = vmatpush2.bf16.msra.mxu0 0
  %198 = vmatprep.subr.bf16.mxu0 0
  %199 = vmatpush2.bf16.msra.mxu0 0
  %200 = vmatprep.subr.bf16.mxu0 0
  %201 = vmatpush2.bf16.msra.mxu0 0
  %202 = vmatprep.subr.bf16.mxu0 0
  %203 = vmatpush2.bf16.msra.mxu0 0
  %204 = vmatprep.subr.bf16.mxu0 0
  %205 = vmatpush2.bf16.msra.mxu0 0
  %206 = vmatprep.subr.bf16.mxu0 0
  %207 = vmatpush2.bf16.msra.mxu0 0
  %208 = vmatprep.mubr.bf16.mxu0 0
  %209 = vmatmul.mubr.bf16.gmra.mxu0 %v174
  %v210 = vpop.f32.mrf.mxu0
  %v211 = vadd.f32 %v165, %v210
  %v212 = vpop.f32.mrf.mxu0
  %v213 = vpop.f32.mrf.mxu0
  %v214 = vpop.f32.mrf.mxu0
  %215 = vdwg.mxu0
  %v216 = vxor.u32 %v211, 2147483648
  %v217 = vmul.f32 %v216, 1.442695
  %v218 = vpow.pop %v217
  %v219 = vadd.f32 %v218, 1.0
  %v220 = vrcp.pop %v219
  %v221 = vmul.f32 1.0, %v220
  %222 = vst [vmem:[%s7] sm:$0xff] %v221
  // Predicated region
  $region30: #{net2_forward.1} parent=0 // pred_check
    _
  $region31: #{net2_forward.1} parent=0 // pred_check_branch
    %224 = sbr.rel (0) target = $region33
  $region32: #{net2_forward.1} parent=0 // pred_region
    _
  $region33: #{net2_forward.1} parent=0 // pred_fallthru
    _
  // Predicated region
  $region34: #{net2_forward.1} parent=0 // pred_check
    _
  $region35: #{net2_forward.1} parent=0 // pred_check_branch
    %226 = sbr.rel (0) target = $region37
  $region36: #{net2_forward.1} parent=0 // pred_region
    _
  $region37: #{net2_forward.1} parent=0 // pred_fallthru
    _

</llo_original>
